<compile_context>
chip_gen: v7x
topology: tpu7x:2x2x1
jax: 0.10.0
libtpu: 0.0.40
codegen_flags: <defaults>
</compile_context>

<pallas_src>
import functools

import jax
import jax.numpy as jnp
from jax.experimental import pallas as pl
from jax.experimental.pallas import tpu as pltpu


def _round_up(x, m):
    return ((x + m - 1) // m) * m


def _tpu_vmem_bytes():
    try:
        return int(pltpu.get_tpu_info().vmem_capacity_bytes)
    except Exception:
        return 64 * 1024 * 1024  # conservative (v7x per-TensorCore)


# --------------------------------------------------------------------------- #
# Kernel
# --------------------------------------------------------------------------- #
def modal_mlp_kernel(x_ref, w1_ref, b1_ref, w2_ref, b2_ref, w3_ref, b3_ref,
                     logits_ref, feat_ref):
    # Cast the streamed x tile to bf16 (no-op if the wrapper already did it).
    x = x_ref[...].astype(jnp.bfloat16)

    # Layer 1: Linear(input_dim, hidden_dim) + ReLU   (Dropout = identity)
    h1 = jnp.dot(x, w1_ref[...], preferred_element_type=jnp.float32)
    h1 = jnp.maximum(h1 + b1_ref[...], 0.0)

    # Layer 2: Linear(hidden_dim, hidden_dim // 2) + ReLU   (Dropout = identity)
    h2 = jnp.dot(h1.astype(w2_ref.dtype), w2_ref[...],
                 preferred_element_type=jnp.float32)
    h2 = jnp.maximum(h2 + b2_ref[...], 0.0)

    # features output
    feat_ref[...] = h2.astype(feat_ref.dtype)

    # Classifier: Linear(hidden_dim // 2, output_dim)
    logits = jnp.dot(h2.astype(w3_ref.dtype), w3_ref[...],
                     preferred_element_type=jnp.float32)
    logits_ref[...] = (logits + b3_ref[...]).astype(logits_ref.dtype)


# --------------------------------------------------------------------------- #
# Planning (Python-level, outside jit)
# --------------------------------------------------------------------------- #
def _plan(batch, input_dim, hidden_dim, hidden_half, output_dim, feat_itemsize):
    k_p = _round_up(input_dim, 128)
    h_p = _round_up(hidden_dim, 128)
    h2_p = _round_up(hidden_half, 128)
    o_p = _round_up(output_dim, 128)

    vmem = _tpu_vmem_bytes()

    # Resident operands: single-buffered bf16 weights + f32 biases.
    weight_bytes = 2 * (k_p * h_p + h_p * h2_p + h2_p * o_p) \
        + 4 * (h_p + h2_p + o_p)

    # Per-batch-row VMEM cost of one grid step:
    #   x tile (worst case f32) x2 buffers, logits f32 x2, features x2,
    #   h1/h2 intermediates (f32 + bf16 copy each).
    per_row = (2 * 4 * k_p
               + 2 * 4 * o_p
               + 2 * feat_itemsize * h2_p
               + 6 * h_p
               + 6 * h2_p)

    budget = max(int(vmem * 0.7) - weight_bytes, 2 * 1024 * 1024)
    tile_m = max(16, min(512, (budget // per_row) // 16 * 16))

    # Megacore (v7x): guarantee >= 2 grid steps when the batch can be split
    # into ~256-row halves, so both TensorCores get work.
    batch16 = _round_up(batch, 16)
    if batch16 >= 512:
        tile_m = min(tile_m, _round_up(batch16 // 2, 16))
    # Never tile past the (16-rounded) batch.
    tile_m = min(tile_m, batch16)

    batch_p = _round_up(batch, tile_m)
    n_tiles = batch_p // tile_m

    # Generation-aware VMEM limit: actual buffer counts (residents x1,
    # streamed tiles x2) + headroom, capped below the physical capacity.
    live_bytes = weight_bytes + tile_m * per_row
    cap = min(100 * 1024 * 1024, int(vmem * 0.9))
    vmem_limit = int(min(max(int(live_bytes * 1.25), 16 * 1024 * 1024), cap))

    return dict(k_p=k_p, h_p=h_p, h2_p=h2_p, o_p=o_p, tile_m=tile_m,
                batch_p=batch_p, n_tiles=n_tiles, vmem_limit=vmem_limit)


# --------------------------------------------------------------------------- #
# Parameter preparation (call-invariant; do this ONCE, outside the hot path)
# --------------------------------------------------------------------------- #
def prepare_params(params):
    """Pad weights/biases to 128-multiples and cast weights to bf16 once."""
    input_dim, hidden_dim = params["w1"].shape
    hidden_half = params["w2"].shape[1]
    output_dim = params["w3"].shape[1]

    k_p = _round_up(input_dim, 128)
    h_p = _round_up(hidden_dim, 128)
    h2_p = _round_up(hidden_half, 128)
    o_p = _round_up(output_dim, 128)

    def pad2(a, rows, cols, dtype):
        out = jnp.zeros((rows, cols), dtype)
        return out.at[: a.shape[0], : a.shape[1]].set(a.astype(dtype))

    prepared = {
        "w1": pad2(params["w1"], k_p, h_p, jnp.bfloat16),
        "b1": pad2(params["b1"], 1, h_p, jnp.float32),
        "w2": pad2(params["w2"], h_p, h2_p, jnp.bfloat16),
        "b2": pad2(params["b2"], 1, h2_p, jnp.float32),
        "w3": pad2(params["w3"], h2_p, o_p, jnp.bfloat16),
        "b3": pad2(params["b3"], 1, o_p, jnp.float32),
    }
    dims = {"input_dim": input_dim, "hidden_dim": hidden_dim,
            "hidden_half": hidden_half, "output_dim": output_dim}
    return prepared, dims


# --------------------------------------------------------------------------- #
# Forward
# --------------------------------------------------------------------------- #
@functools.partial(
    jax.jit,
    static_argnames=("out_dim", "feat_dim", "tile_m", "vmem_limit",
                     "feature_dtype"))
def _forward_impl(x, w1, b1, w2, b2, w3, b3, *, out_dim, feat_dim, tile_m,
                  vmem_limit, feature_dtype):
    feat_dt = jnp.dtype(feature_dtype)
    batch, input_dim = x.shape
    k_p, h_p = w1.shape
    h2_p = w2.shape[1]
    o_p = w3.shape[1]

    batch_p = _round_up(batch, tile_m)
    n_tiles = batch_p // tile_m

    if batch_p != batch or input_dim != k_p:
        # Pad (and cast to bf16) only when actually required.
        x_in = jnp.zeros((batch_p, k_p), jnp.bfloat16)
        x_in = x_in.at[:batch, :input_dim].set(x.astype(jnp.bfloat16))
    else:
        # No extra HBM pass over x: stream f32 tiles, cast in-kernel.
        x_in = x

    cost = pl.CostEstimate(
        flops=2 * batch_p * (k_p * h_p + h_p * h2_p + h2_p * o_p),
        transcendentals=0,
        bytes_accessed=(x_in.size * x_in.dtype.itemsize
                        + (w1.size + w2.size + w3.size) * 2
                        + (b1.size + b2.size + b3.size) * 4
                        + batch_p * o_p * 4
                        + batch_p * h2_p * feat_dt.itemsize),
    )

    def resident(shape):
        # Constant index_map => no refetch to hide: keep it single-buffered.
        return pl.BlockSpec(shape, lambda i: (0, 0),
                            pipeline_mode=pl.Buffered(1))

    grid_spec = pltpu.PrefetchScalarGridSpec(
        num_scalar_prefetch=0,
        grid=(n_tiles,),
        in_specs=[
            pl.BlockSpec((tile_m, k_p), lambda i: (i, 0)),   # x tile (streamed)
            resident((k_p, h_p)),                            # w1
            resident((1, h_p)),                              # b1
            resident((h_p, h2_p)),                           # w2
            resident((1, h2_p)),                             # b2
            resident((h2_p, o_p)),                           # w3
            resident((1, o_p)),                              # b3
        ],
        out_specs=(
            pl.BlockSpec((tile_m, o_p), lambda i: (i, 0)),   # logits tile
            pl.BlockSpec((tile_m, h2_p), lambda i: (i, 0)),  # features tile
        ),
    )

    logits_p, feat_p = pl.pallas_call(
        modal_mlp_kernel,
        out_shape=(
            jax.ShapeDtypeStruct((batch_p, o_p), jnp.float32),
            jax.ShapeDtypeStruct((batch_p, h2_p), feat_dt),
        ),
        grid_spec=grid_spec,
        compiler_params=pltpu.CompilerParams(
            dimension_semantics=("parallel",),
            vmem_limit_bytes=vmem_limit,
        ),
        cost_estimate=cost,
    )(x_in, w1, b1, w2, b2, w3, b3)

    return logits_p[:batch, :out_dim], feat_p[:batch, :feat_dim]


def modal_mlp_forward(x, prepared, dims, *, feature_dtype=jnp.float32):
    """x: [batch, input_dim] f32.  prepared/dims from prepare_params()."""
    batch, input_dim = x.shape
    assert input_dim == dims["input_dim"]
    feat_dt = jnp.dtype(feature_dtype)
    plan = _plan(batch, input_dim, dims["hidden_dim"], dims["hidden_half"],
                 dims["output_dim"], feat_dt.itemsize)
    return _forward_impl(
        x, prepared["w1"], prepared["b1"], prepared["w2"], prepared["b2"],
        prepared["w3"], prepared["b3"],
        out_dim=dims["output_dim"], feat_dim=dims["hidden_half"],
        tile_m=plan["tile_m"], vmem_limit=plan["vmem_limit"],
        feature_dtype=feat_dt.name)


# --------------------------------------------------------------------------- #
# Init / reference / demo
# --------------------------------------------------------------------------- #
def init_params(key, input_dim, hidden_dim, output_dim):
    """Deterministic synthetic params (PyTorch nn.Linear-style uniform init)."""
    ks = jax.random.split(key, 6)

    def linear_init(kw, kb, fan_in, fan_out):
        bound = 1.0 / (fan_in ** 0.5)
        w = jax.random.uniform(kw, (fan_in, fan_out), jnp.float32, -bound, bound)
        b = jax.random.uniform(kb, (1, fan_out), jnp.float32, -bound, bound)
        return w, b

    w1, b1 = linear_init(ks[0], ks[1], input_dim, hidden_dim)
    w2, b2 = linear_init(ks[2], ks[3], hidden_dim, hidden_dim // 2)
    w3, b3 = linear_init(ks[4], ks[5], hidden_dim // 2, output_dim)
    return {"w1": w1, "b1": b1, "w2": w2, "b2": b2, "w3": w3, "b3": b3}


def reference_forward(x, p):
    """Pure-JAX reference matching the kernel's bf16-input / f32-accum numerics."""
    def bf(a):
        return a.astype(jnp.bfloat16).astype(jnp.float32)

    h1 = jnp.maximum(bf(x) @ bf(p["w1"]) + p["b1"], 0.0)
    h2 = jnp.maximum(bf(h1) @ bf(p["w2"]) + p["b2"], 0.0)
    logits = bf(h2) @ bf(p["w3"]) + p["b3"]
    return logits, h2


if __name__ == "__main__":
    batch, input_dim, hidden_dim, output_dim = 2, 16, 32, 8

    key = jax.random.PRNGKey(0)
    kx, kp = jax.random.split(key)
    x = jax.random.normal(kx, (batch, input_dim), jnp.float32)
    params = init_params(kp, input_dim, hidden_dim, output_dim)

    # Pad/cast the call-invariant weights once (outside the hot path).
    prepared, dims = prepare_params(params)

    logits, features = modal_mlp_forward(x, prepared, dims)
    jax.block_until_ready((logits, features))

    ref_logits, ref_features = reference_forward(x, params)
    assert logits.shape == (batch, output_dim)
    assert features.shape == (batch, hidden_dim // 2)
    assert jnp.allclose(logits, ref_logits, atol=1e-3, rtol=1e-3), (
        jnp.max(jnp.abs(logits - ref_logits)))
    assert jnp.allclose(features, ref_features, atol=1e-3, rtol=1e-3), (
        jnp.max(jnp.abs(features - ref_features)))

    print("KERNEL_OK")
</pallas_src>

<mosaic_0001>
module attributes {stable_mosaic.version = 11 : i64} {
  func.func @modal_mlp_kernel(%arg0: i32, %arg1: memref<16x128xbf16, #tpu.memory_space<vmem>>, %arg2: memref<128x128xbf16, #tpu.memory_space<vmem>>, %arg3: memref<1x128xf32, #tpu.memory_space<vmem>>, %arg4: memref<128x128xbf16, #tpu.memory_space<vmem>>, %arg5: memref<1x128xf32, #tpu.memory_space<vmem>>, %arg6: memref<128x128xbf16, #tpu.memory_space<vmem>>, %arg7: memref<1x128xf32, #tpu.memory_space<vmem>>, %arg8: memref<16x128xf32, #tpu.memory_space<vmem>>, %arg9: memref<16x128xf32, #tpu.memory_space<vmem>>) attributes {dimension_semantics = [#tpu.dimension_semantics<parallel>], iteration_bounds = array<i64: 1>, scalar_prefetch = 0 : i64, scratch_operands = 0 : i64, tpu.core_type = #tpu.core_type<tc>, window_params = [{transform_indices = @transform_0, window_bounds = array<i64: 16, 128>}, {pipeline_mode = #tpu.pipeline_mode<synchronous>, transform_indices = @transform_1, window_bounds = array<i64: 128, 128>}, {pipeline_mode = #tpu.pipeline_mode<synchronous>, transform_indices = @transform_2, window_bounds = array<i64: 1, 128>}, {pipeline_mode = #tpu.pipeline_mode<synchronous>, transform_indices = @transform_3, window_bounds = array<i64: 128, 128>}, {pipeline_mode = #tpu.pipeline_mode<synchronous>, transform_indices = @transform_4, window_bounds = array<i64: 1, 128>}, {pipeline_mode = #tpu.pipeline_mode<synchronous>, transform_indices = @transform_5, window_bounds = array<i64: 128, 128>}, {pipeline_mode = #tpu.pipeline_mode<synchronous>, transform_indices = @transform_6, window_bounds = array<i64: 1, 128>}, {transform_indices = @transform_7, window_bounds = array<i64: 16, 128>}, {transform_indices = @transform_8, window_bounds = array<i64: 16, 128>}]} {
    %c0 = arith.constant 0 : index
    %c0_0 = arith.constant 0 : index
    %0 = vector.load %arg1[%c0, %c0_0] : memref<16x128xbf16, #tpu.memory_space<vmem>>, vector<16x128xbf16>
    %c0_1 = arith.constant 0 : index
    %c0_2 = arith.constant 0 : index
    %1 = vector.load %arg2[%c0_1, %c0_2] : memref<128x128xbf16, #tpu.memory_space<vmem>>, vector<128x128xbf16>
    %cst = arith.constant dense<0.000000e+00> : vector<16x128xf32>
    %2 = tpu.matmul %0, %1, %cst {dimension_numbers = #tpu.dot_dimension_numbers<[1], [0], [0], [1], [0, 0, 1, 1], [], []>} : vector<16x128xbf16>, vector<128x128xbf16>, vector<16x128xf32> -> vector<16x128xf32>
    %c0_3 = arith.constant 0 : index
    %c0_4 = arith.constant 0 : index
    %3 = vector.load %arg3[%c0_3, %c0_4] : memref<1x128xf32, #tpu.memory_space<vmem>>, vector<1x128xf32>
    %4 = vector.broadcast %3 : vector<1x128xf32> to vector<16x128xf32>
    %5 = arith.addf %2, %4 : vector<16x128xf32>
    %cst_5 = arith.constant 0.000000e+00 : f32
    %6 = vector.broadcast %cst_5 : f32 to vector<16x128xf32>
    %7 = arith.maximumf %5, %6 : vector<16x128xf32>
    %8 = arith.truncf %7 : vector<16x128xf32> to vector<16x128xbf16>
    %c0_6 = arith.constant 0 : index
    %c0_7 = arith.constant 0 : index
    %9 = vector.load %arg4[%c0_6, %c0_7] : memref<128x128xbf16, #tpu.memory_space<vmem>>, vector<128x128xbf16>
    %cst_8 = arith.constant dense<0.000000e+00> : vector<16x128xf32>
    %10 = tpu.matmul %8, %9, %cst_8 {dimension_numbers = #tpu.dot_dimension_numbers<[1], [0], [0], [1], [0, 0, 1, 1], [], []>} : vector<16x128xbf16>, vector<128x128xbf16>, vector<16x128xf32> -> vector<16x128xf32>
    %c0_9 = arith.constant 0 : index
    %c0_10 = arith.constant 0 : index
    %11 = vector.load %arg5[%c0_9, %c0_10] : memref<1x128xf32, #tpu.memory_space<vmem>>, vector<1x128xf32>
    %12 = vector.broadcast %11 : vector<1x128xf32> to vector<16x128xf32>
    %13 = arith.addf %10, %12 : vector<16x128xf32>
    %cst_11 = arith.constant 0.000000e+00 : f32
    %14 = vector.broadcast %cst_11 : f32 to vector<16x128xf32>
    %15 = arith.maximumf %13, %14 : vector<16x128xf32>
    %c0_12 = arith.constant 0 : index
    %c0_13 = arith.constant 0 : index
    %16 = vector.load %arg9[%c0_12, %c0_13] : memref<16x128xf32, #tpu.memory_space<vmem>>, vector<16x128xf32>
    tpu.vector_store %arg9[%c0_12, %c0_13], %15 {strides = array<i32>} : memref<16x128xf32, #tpu.memory_space<vmem>>, vector<16x128xf32>,
    %17 = arith.truncf %15 : vector<16x128xf32> to vector<16x128xbf16>
    %c0_14 = arith.constant 0 : index
    %c0_15 = arith.constant 0 : index
    %18 = vector.load %arg6[%c0_14, %c0_15] : memref<128x128xbf16, #tpu.memory_space<vmem>>, vector<128x128xbf16>
    %cst_16 = arith.constant dense<0.000000e+00> : vector<16x128xf32>
    %19 = tpu.matmul %17, %18, %cst_16 {dimension_numbers = #tpu.dot_dimension_numbers<[1], [0], [0], [1], [0, 0, 1, 1], [], []>} : vector<16x128xbf16>, vector<128x128xbf16>, vector<16x128xf32> -> vector<16x128xf32>
    %c0_17 = arith.constant 0 : index
    %c0_18 = arith.constant 0 : index
    %20 = vector.load %arg7[%c0_17, %c0_18] : memref<1x128xf32, #tpu.memory_space<vmem>>, vector<1x128xf32>
    %21 = vector.broadcast %20 : vector<1x128xf32> to vector<16x128xf32>
    %22 = arith.addf %19, %21 : vector<16x128xf32>
    %c0_19 = arith.constant 0 : index
    %c0_20 = arith.constant 0 : index
    %23 = vector.load %arg8[%c0_19, %c0_20] : memref<16x128xf32, #tpu.memory_space<vmem>>, vector<16x128xf32>
    tpu.vector_store %arg8[%c0_19, %c0_20], %22 {strides = array<i32>} : memref<16x128xf32, #tpu.memory_space<vmem>>, vector<16x128xf32>,
    return
  }
  func.func @transform_0(%arg0: i32) -> (i32, i32) {
    %c0_i32 = arith.constant 0 : i32
    %c0_i32_0 = arith.constant 0 : i32
    return %arg0, %c0_i32 : i32, i32
  }
  func.func @transform_1(%arg0: i32) -> (i32, i32) {
    %c0_i32 = arith.constant 0 : i32
    %c0_i32_0 = arith.constant 0 : i32
    %c0_i32_1 = arith.constant 0 : i32
    return %c0_i32, %c0_i32_0 : i32, i32
  }
  func.func @transform_2(%arg0: i32) -> (i32, i32) {
    %c0_i32 = arith.constant 0 : i32
    %c0_i32_0 = arith.constant 0 : i32
    %c0_i32_1 = arith.constant 0 : i32
    return %c0_i32, %c0_i32_0 : i32, i32
  }
  func.func @transform_3(%arg0: i32) -> (i32, i32) {
    %c0_i32 = arith.constant 0 : i32
    %c0_i32_0 = arith.constant 0 : i32
    %c0_i32_1 = arith.constant 0 : i32
    return %c0_i32, %c0_i32_0 : i32, i32
  }
  func.func @transform_4(%arg0: i32) -> (i32, i32) {
    %c0_i32 = arith.constant 0 : i32
    %c0_i32_0 = arith.constant 0 : i32
    %c0_i32_1 = arith.constant 0 : i32
    return %c0_i32, %c0_i32_0 : i32, i32
  }
  func.func @transform_5(%arg0: i32) -> (i32, i32) {
    %c0_i32 = arith.constant 0 : i32
    %c0_i32_0 = arith.constant 0 : i32
    %c0_i32_1 = arith.constant 0 : i32
    return %c0_i32, %c0_i32_0 : i32, i32
  }
  func.func @transform_6(%arg0: i32) -> (i32, i32) {
    %c0_i32 = arith.constant 0 : i32
    %c0_i32_0 = arith.constant 0 : i32
    %c0_i32_1 = arith.constant 0 : i32
    return %c0_i32, %c0_i32_0 : i32, i32
  }
  func.func @transform_7(%arg0: i32) -> (i32, i32) {
    %c0_i32 = arith.constant 0 : i32
    %c0_i32_0 = arith.constant 0 : i32
    return %arg0, %c0_i32 : i32, i32
  }
  func.func @transform_8(%arg0: i32) -> (i32, i32) {
    %c0_i32 = arith.constant 0 : i32
    %c0_i32_0 = arith.constant 0 : i32
    return %arg0, %c0_i32 : i32, i32
  }
}

</mosaic_0001>

<llo_original>
// kernel: _forward_impl.1
$region0: #{_forward_impl.1}
  #allocation0 [shape = 'u32[]', space=smem, size = 0x4, offset = 0x4, fixed_abs, tag = 'smem constant byte address 0x4 - core index']
  #allocation1 [shape = 'u32[144,128]{1,0:T(1,128)}', space=vmem, size = 0x12000, scoped, tag = 'internal scratch']
  %s0 = inlined_call_operand.vmem [shape: bf16[16,128], index: 0, kind: input, shape index: {}]
  %s1 = inlined_call_operand.hbm [shape: bf16[128,128], index: 1, kind: input, shape index: {}]
  %s2 = inlined_call_operand.vmem [shape: f32[1,128], index: 2, kind: input, shape index: {}]
  %s3 = inlined_call_operand.hbm [shape: bf16[128,128], index: 3, kind: input, shape index: {}]
  %s4 = inlined_call_operand.vmem [shape: f32[1,128], index: 4, kind: input, shape index: {}]
  %s5 = inlined_call_operand.hbm [shape: bf16[128,128], index: 5, kind: input, shape index: {}]
  %s6 = inlined_call_operand.vmem [shape: f32[1,128], index: 6, kind: input, shape index: {}]
  %s7 = inlined_call_operand.vmem [shape: f32[16,128], index: 7, kind: output, shape index: {0}]
  %s8 = inlined_call_operand.vmem [shape: f32[16,128], index: 8, kind: output, shape index: {1}]
  %9 = xla_tuple %s7, %s8
  %s10 = sld [smem:[#allocation0]]
  $region58: #{_forward_impl.1} parent=0
    _
  %s12 = ssub.s32 1, %s10
  %s13 = scalar_select 0, %s12, %s10
  $region1: #{_forward_impl.1} parent=0
    #allocation2 [shape = 'u8[32768]{0}', space=vmem, size = 0x8000, scoped, tag = 'input window, operand 1, single buffered']
    #allocation3 [shape = 's32[1]{0}', space=sflag, size = 0x4, scoped, tag = 'scoped memory for _forward_impl.1']
    #allocation4 [shape = 'u8[32768]{0}', space=vmem, size = 0x8000, scoped, tag = 'input window, operand 3, single buffered']
    #allocation5 [shape = 's32[1]{0}', space=sflag, size = 0x4, scoped, tag = 'scoped memory for _forward_impl.1']
    #allocation6 [shape = 'u8[32768]{0}', space=vmem, size = 0x8000, scoped, tag = 'input window, operand 5, single buffered']
    %14 = vsyncpa [#allocation3], 0
    %15 = vsyncpa [#allocation5], 0
    // Predicated region
    $region2: #{_forward_impl.1} parent=1 // pred_check
      _
    $region3: #{_forward_impl.1} parent=1 // pred_check_branch
      %17 = sbr.rel (0) target = $region5
    $region4: #{_forward_impl.1} parent=1 // pred_region
      _
    $region5: #{_forward_impl.1} parent=1 // pred_fallthru
      _
    // Predicated region
    $region6: #{_forward_impl.1} parent=1 // pred_check
      _
    $region7: #{_forward_impl.1} parent=1 // pred_check_branch
      %19 = sbr.rel (0) target = $region9
    $region8: #{_forward_impl.1} parent=1 // pred_region
      %s21 = ssub.s32 1024, 1024
      %22 = vsyncadd [#allocation3], %s21
      %s23 = sshll.u32 [#allocation2], 4
      %s24 = int_to_ptr.vmem [resolvable:$true] %s23
      %29 = dma.hbm_to_vmem [thread:$0]  %s1, 1024, %s24, [#allocation3], 64, 64, 4
    $region9: #{_forward_impl.1} parent=1 // pred_fallthru
      _
    // Predicated region
    $region10: #{_forward_impl.1} parent=1 // pred_check
      _
    $region11: #{_forward_impl.1} parent=1 // pred_check_branch
      %31 = sbr.rel (0) target = $region13
    $region12: #{_forward_impl.1} parent=1 // pred_region
      _
    $region13: #{_forward_impl.1} parent=1 // pred_fallthru
      _
    // Predicated region
    $region14: #{_forward_impl.1} parent=1 // pred_check
      _
    $region15: #{_forward_impl.1} parent=1 // pred_check_branch
      %33 = sbr.rel (0) target = $region17
    $region16: #{_forward_impl.1} parent=1 // pred_region
      %s35 = ssub.s32 1024, 1024
      %36 = vsyncadd [#allocation5], %s35
      %s37 = sshll.u32 [#allocation4], 4
      %s38 = int_to_ptr.vmem [resolvable:$true] %s37
      %43 = dma.hbm_to_vmem [thread:$0]  %s3, 1024, %s38, [#allocation5], 64, 64, 4
    $region17: #{_forward_impl.1} parent=1 // pred_fallthru
      _
    // Predicated region
    $region18: #{_forward_impl.1} parent=1 // pred_check
      _
    $region19: #{_forward_impl.1} parent=1 // pred_check_branch
      %45 = sbr.rel (0) target = $region21
    $region20: #{_forward_impl.1} parent=1 // pred_region
      _
    $region21: #{_forward_impl.1} parent=1 // pred_fallthru
      _
    // Predicated region
    $region22: #{_forward_impl.1} parent=1 // pred_check
      _
    $region23: #{_forward_impl.1} parent=1 // pred_check_branch
      %47 = sbr.rel (0) target = $region25
    $region24: #{_forward_impl.1} parent=1 // pred_region
      %s49 = ssub.s32 1024, 1024
      %50 = vsyncadd [#allocation5], %s49
      %s51 = sshll.u32 [#allocation6], 4
      %s52 = int_to_ptr.vmem [resolvable:$true] %s51
      %57 = dma.hbm_to_vmem [thread:$0]  %s5, 1024, %s52, [#allocation5], 64, 64, 4
    $region25: #{_forward_impl.1} parent=1 // pred_fallthru
      _
    // Predicated region
    $region26: #{_forward_impl.1} parent=1 // pred_check
      _
    $region27: #{_forward_impl.1} parent=1 // pred_check_branch
      %59 = sbr.rel (0) target = $region29
    $region28: #{_forward_impl.1} parent=1 // pred_region
      _
    $region29: #{_forward_impl.1} parent=1 // pred_fallthru
      _
    // Predicated region
    $region30: #{_forward_impl.1} parent=1 // pred_check
      _
    $region31: #{_forward_impl.1} parent=1 // pred_check_branch
      %61 = sbr.rel (0) target = $region33
    $region32: #{_forward_impl.1} parent=1 // pred_region
      %62 = dma.done [#allocation3], 1024
    $region33: #{_forward_impl.1} parent=1 // pred_fallthru
      _
    // Predicated region
    $region34: #{_forward_impl.1} parent=1 // pred_check
      _
    $region35: #{_forward_impl.1} parent=1 // pred_check_branch
      %64 = sbr.rel (0) target = $region37
    $region36: #{_forward_impl.1} parent=1 // pred_region
      %65 = dma.done [#allocation5], 1024
    $region37: #{_forward_impl.1} parent=1 // pred_fallthru
      _
    // Predicated region
    $region38: #{_forward_impl.1} parent=1 // pred_check
      _
    $region39: #{_forward_impl.1} parent=1 // pred_check_branch
      %67 = sbr.rel (0) target = $region41
    $region40: #{_forward_impl.1} parent=1 // pred_region
      %68 = dma.done [#allocation5], 1024
    $region41: #{_forward_impl.1} parent=1 // pred_fallthru
      _
    %v70 = vld [vmem:[%s0] sm:$0xf]
    %v71 = vld [vmem:[%s0 + $0x4] sm:$0xf]
    %v72 = vld [vmem:[#allocation2] sm:$0xf]
    %v73 = vld [vmem:[#allocation2 + $0x4] sm:$0xf]
    %v74 = vld [vmem:[#allocation2 + $0x8] sm:$0xf]
    %v75 = vld [vmem:[#allocation2 + $0xc] sm:$0xf]
    %v76 = vld [vmem:[#allocation2 + $0x10] sm:$0xf]
    %v77 = vld [vmem:[#allocation2 + $0x14] sm:$0xf]
    %v78 = vld [vmem:[#allocation2 + $0x18] sm:$0xf]
    %v79 = vld [vmem:[#allocation2 + $0x1c] sm:$0xf]
    %v80 = vld [vmem:[#allocation2 + $0x20] sm:$0xf]
    %v81 = vld [vmem:[#allocation2 + $0x24] sm:$0xf]
    %v82 = vld [vmem:[#allocation2 + $0x28] sm:$0xf]
    %v83 = vld [vmem:[#allocation2 + $0x2c] sm:$0xf]
    %v84 = vld [vmem:[#allocation2 + $0x30] sm:$0xf]
    %v85 = vld [vmem:[#allocation2 + $0x34] sm:$0xf]
    %v86 = vld [vmem:[#allocation2 + $0x38] sm:$0xf]
    %v87 = vld [vmem:[#allocation2 + $0x3c] sm:$0xf]
    %v88 = vld [vmem:[%s2] sm:$0x1]
    %v90 = vlaneseq
    %v91 = vshrl.u32 %v90, 7
    %v92 = vsub.s32 0, %v91
    %v93 = vrot.slane %v88, %v92
    %v97 = vunpack.c.l.b16 %v70
    %v98 = vunpack.c.l.b16 %v71
    %v99 = vpack.c.b16 %v98, %v97
    %v117 = vunpack.c.l.b16 %v72
    %v118 = vunpack.c.l.b16 %v73
    %v119 = vunpack.c.l.b16 %v74
    %v120 = vunpack.c.l.b16 %v75
    %v121 = vunpack.c.l.b16 %v76
    %v122 = vunpack.c.l.b16 %v77
    %v123 = vunpack.c.l.b16 %v78
    %v124 = vunpack.c.l.b16 %v79
    %v125 = vunpack.c.l.b16 %v80
    %v126 = vunpack.c.l.b16 %v81
    %v127 = vunpack.c.l.b16 %v82
    %v128 = vunpack.c.l.b16 %v83
    %v129 = vunpack.c.l.b16 %v84
    %v130 = vunpack.c.l.b16 %v85
    %v131 = vunpack.c.l.b16 %v86
    %v132 = vunpack.c.l.b16 %v87
    %v133 = vpack.c.b16 %v118, %v117
    %v134 = vpack.c.b16 %v120, %v119
    %v135 = vpack.c.b16 %v122, %v121
    %v136 = vpack.c.b16 %v124, %v123
    %v137 = vpack.c.b16 %v126, %v125
    %v138 = vpack.c.b16 %v128, %v127
    %v139 = vpack.c.b16 %v130, %v129
    %v140 = vpack.c.b16 %v132, %v131
    %149 = vmatprep.subr.bf16.mxu0 0
    %150 = vmatpush1.bf16.msra.mxu0 %v133
    %151 = vmatprep.subr.bf16.mxu0 0
    %152 = vmatpush1.bf16.msra.mxu0 %v134
    %153 = vmatprep.subr.bf16.mxu0 0
    %154 = vmatpush1.bf16.msra.mxu0 %v135
    %155 = vmatprep.subr.bf16.mxu0 0
    %156 = vmatpush1.bf16.msra.mxu0 %v136
    %157 = vmatprep.subr.bf16.mxu0 0
    %158 = vmatpush1.bf16.msra.mxu0 %v137
    %159 = vmatprep.subr.bf16.mxu0 0
    %160 = vmatpush1.bf16.msra.mxu0 %v138
    %161 = vmatprep.subr.bf16.mxu0 0
    %162 = vmatpush1.bf16.msra.mxu0 %v139
    %163 = vmatprep.subr.bf16.mxu0 0
    %164 = vmatpush1.bf16.msra.mxu0 %v140
    %165 = vmatprep.subr.bf16.mxu0 0
    %166 = vmatpush1.bf16.msra.mxu0 0
    %167 = vmatprep.subr.bf16.mxu0 0
    %168 = vmatpush1.bf16.msra.mxu0 0
    %169 = vmatprep.subr.bf16.mxu0 0
    %170 = vmatpush1.bf16.msra.mxu0 0
    %171 = vmatprep.subr.bf16.mxu0 0
    %172 = vmatpush1.bf16.msra.mxu0 0
    %173 = vmatprep.subr.bf16.mxu0 0
    %174 = vmatpush1.bf16.msra.mxu0 0
    %175 = vmatprep.subr.bf16.mxu0 0
    %176 = vmatpush1.bf16.msra.mxu0 0
    %177 = vmatprep.subr.bf16.mxu0 0
    %178 = vmatpush1.bf16.msra.mxu0 0
    %179 = vmatprep.subr.bf16.mxu0 0
    %180 = vmatpush1.bf16.msra.mxu0 0
    %181 = vmatprep.mubr.bf16.mxu0 0
    %182 = vmatmul.mubr.bf16.gmra.mrb[0].mxu0 %v99
    %v183 = vpop.f32.mrb[0].mxu0
    %v184 = vadd.f32 %v93, %v183
    %v185 = vpop.f32.mrb[0].mxu0
    %v186 = vpop.f32.mrb[0].mxu0
    %v187 = vadd.f32 %v93, %v186
    %v188 = vpop.f32.mrb[0].mxu0
    %189 = vdwg.mxu0
    %v190 = vmax.f32 %v184, 0.0
    %v191 = vmax.f32 %v187, 0.0
    %v192 = vpack.c.bf16 %v191, %v190
    %v193 = vld [vmem:[#allocation4] sm:$0xf]
    %v194 = vld [vmem:[#allocation4 + $0x4] sm:$0xf]
    %v195 = vld [vmem:[#allocation4 + $0x8] sm:$0xf]
    %v196 = vld [vmem:[#allocation4 + $0xc] sm:$0xf]
    %v197 = vld [vmem:[#allocation4 + $0x10] sm:$0xf]
    %v198 = vld [vmem:[#allocation4 + $0x14] sm:$0xf]
    %v199 = vld [vmem:[#allocation4 + $0x18] sm:$0xf]
    %v200 = vld [vmem:[#allocation4 + $0x1c] sm:$0xf]
    %v201 = vld [vmem:[#allocation4 + $0x20] sm:$0xf]
    %v202 = vld [vmem:[#allocation4 + $0x24] sm:$0xf]
    %v203 = vld [vmem:[#allocation4 + $0x28] sm:$0xf]
    %v204 = vld [vmem:[#allocation4 + $0x2c] sm:$0xf]
    %v205 = vld [vmem:[#allocation4 + $0x30] sm:$0xf]
    %v206 = vld [vmem:[#allocation4 + $0x34] sm:$0xf]
    %v207 = vld [vmem:[#allocation4 + $0x38] sm:$0xf]
    %v208 = vld [vmem:[#allocation4 + $0x3c] sm:$0xf]
    %v209 = vld [vmem:[%s4] sm:$0x1]
    %v211 = vlaneseq
    %v212 = vshrl.u32 %v211, 7
    %v213 = vsub.s32 0, %v212
    %v214 = vrot.slane %v209, %v213
    %v232 = vunpack.c.l.b16 %v193
    %v233 = vunpack.c.l.b16 %v194
    %v234 = vunpack.c.l.b16 %v195
    %v235 = vunpack.c.l.b16 %v196
    %v236 = vunpack.c.l.b16 %v197
    %v237 = vunpack.c.l.b16 %v198
    %v238 = vunpack.c.l.b16 %v199
    %v239 = vunpack.c.l.b16 %v200
    %v240 = vunpack.c.l.b16 %v201
    %v241 = vunpack.c.l.b16 %v202
    %v242 = vunpack.c.l.b16 %v203
    %v243 = vunpack.c.l.b16 %v204
    %v244 = vunpack.c.l.b16 %v205
    %v245 = vunpack.c.l.b16 %v206
    %v246 = vunpack.c.l.b16 %v207
    %v247 = vunpack.c.l.b16 %v208
    %v248 = vpack.c.b16 %v233, %v232
    %v249 = vpack.c.b16 %v235, %v234
    %v250 = vpack.c.b16 %v237, %v236
    %v251 = vpack.c.b16 %v239, %v238
    %v252 = vpack.c.b16 %v241, %v240
    %v253 = vpack.c.b16 %v243, %v242
    %v254 = vpack.c.b16 %v245, %v244
    %v255 = vpack.c.b16 %v247, %v246
    %264 = vmatprep.subr.bf16.mxu0 0
    %265 = vmatpush1.bf16.msra.mxu0 %v248
    %266 = vmatprep.subr.bf16.mxu0 0
    %267 = vmatpush1.bf16.msra.mxu0 %v249
    %268 = vmatprep.subr.bf16.mxu0 0
    %269 = vmatpush1.bf16.msra.mxu0 %v250
    %270 = vmatprep.subr.bf16.mxu0 0
    %271 = vmatpush1.bf16.msra.mxu0 %v251
    %272 = vmatprep.subr.bf16.mxu0 0
    %273 = vmatpush1.bf16.msra.mxu0 %v252
    %274 = vmatprep.subr.bf16.mxu0 0
    %275 = vmatpush1.bf16.msra.mxu0 %v253
    %276 = vmatprep.subr.bf16.mxu0 0
    %277 = vmatpush1.bf16.msra.mxu0 %v254
    %278 = vmatprep.subr.bf16.mxu0 0
    %279 = vmatpush1.bf16.msra.mxu0 %v255
    %280 = vmatprep.subr.bf16.mxu0 0
    %281 = vmatpush1.bf16.msra.mxu0 0
    %282 = vmatprep.subr.bf16.mxu0 0
    %283 = vmatpush1.bf16.msra.mxu0 0
    %284 = vmatprep.subr.bf16.mxu0 0
    %285 = vmatpush1.bf16.msra.mxu0 0
    %286 = vmatprep.subr.bf16.mxu0 0
    %287 = vmatpush1.bf16.msra.mxu0 0
    %288 = vmatprep.subr.bf16.mxu0 0
    %289 = vmatpush1.bf16.msra.mxu0 0
    %290 = vmatprep.subr.bf16.mxu0 0
    %291 = vmatpush1.bf16.msra.mxu0 0
    %292 = vmatprep.subr.bf16.mxu0 0
    %293 = vmatpush1.bf16.msra.mxu0 0
    %294 = vmatprep.subr.bf16.mxu0 0
    %295 = vmatpush1.bf16.msra.mxu0 0
    %296 = vmatprep.mubr.bf16.mxu0 0
    %297 = vmatmul.mubr.bf16.gmra.mrb[0].mxu0 %v192
    %v298 = vpop.f32.mrb[0].mxu0
    %v299 = vadd.f32 %v214, %v298
    %v300 = vpop.f32.mrb[0].mxu0
    %v301 = vpop.f32.mrb[0].mxu0
    %v302 = vadd.f32 %v214, %v301
    %v303 = vpop.f32.mrb[0].mxu0
    %304 = vdwg.mxu0
    %v305 = vmax.f32 %v299, 0.0
    %v306 = vmax.f32 %v302, 0.0
    %307 = vst [vmem:[%s8] sm:$0xff] %v305
    %308 = vst [vmem:[%s8 + $0x8] sm:$0xff] %v306
    %v309 = vpack.c.bf16 %v306, %v305
    %v310 = vld [vmem:[#allocation6] sm:$0xf]
    %v311 = vld [vmem:[#allocation6 + $0x4] sm:$0xf]
    %v312 = vld [vmem:[#allocation6 + $0x8] sm:$0xf]
    %v313 = vld [vmem:[#allocation6 + $0xc] sm:$0xf]
    %v314 = vld [vmem:[#allocation6 + $0x10] sm:$0xf]
    %v315 = vld [vmem:[#allocation6 + $0x14] sm:$0xf]
    %v316 = vld [vmem:[#allocation6 + $0x18] sm:$0xf]
    %v317 = vld [vmem:[#allocation6 + $0x1c] sm:$0xf]
    %v318 = vld [vmem:[#allocation6 + $0x20] sm:$0xf]
    %v319 = vld [vmem:[#allocation6 + $0x24] sm:$0xf]
    %v320 = vld [vmem:[#allocation6 + $0x28] sm:$0xf]
    %v321 = vld [vmem:[#allocation6 + $0x2c] sm:$0xf]
    %v322 = vld [vmem:[#allocation6 + $0x30] sm:$0xf]
    %v323 = vld [vmem:[#allocation6 + $0x34] sm:$0xf]
    %v324 = vld [vmem:[#allocation6 + $0x38] sm:$0xf]
    %v325 = vld [vmem:[#allocation6 + $0x3c] sm:$0xf]
    %v326 = vld [vmem:[%s6] sm:$0x1]
    %v328 = vlaneseq
    %v329 = vshrl.u32 %v328, 7
    %v330 = vsub.s32 0, %v329
    %v331 = vrot.slane %v326, %v330
    %v349 = vunpack.c.l.b16 %v310
    %v350 = vunpack.c.l.b16 %v311
    %v351 = vunpack.c.l.b16 %v312
    %v352 = vunpack.c.l.b16 %v313
    %v353 = vunpack.c.l.b16 %v314
    %v354 = vunpack.c.l.b16 %v315
    %v355 = vunpack.c.l.b16 %v316
    %v356 = vunpack.c.l.b16 %v317
    %v357 = vunpack.c.l.b16 %v318
    %v358 = vunpack.c.l.b16 %v319
    %v359 = vunpack.c.l.b16 %v320
    %v360 = vunpack.c.l.b16 %v321
    %v361 = vunpack.c.l.b16 %v322
    %v362 = vunpack.c.l.b16 %v323
    %v363 = vunpack.c.l.b16 %v324
    %v364 = vunpack.c.l.b16 %v325
    %v365 = vpack.c.b16 %v350, %v349
    %v366 = vpack.c.b16 %v352, %v351
    %v367 = vpack.c.b16 %v354, %v353
    %v368 = vpack.c.b16 %v356, %v355
    %v369 = vpack.c.b16 %v358, %v357
    %v370 = vpack.c.b16 %v360, %v359
    %v371 = vpack.c.b16 %v362, %v361
    %v372 = vpack.c.b16 %v364, %v363
    %381 = vmatprep.subr.bf16.mxu0 0
    %382 = vmatpush1.bf16.msra.mxu0 %v365
    %383 = vmatprep.subr.bf16.mxu0 0
    %384 = vmatpush1.bf16.msra.mxu0 %v366
    %385 = vmatprep.subr.bf16.mxu0 0
    %386 = vmatpush1.bf16.msra.mxu0 %v367
    %387 = vmatprep.subr.bf16.mxu0 0
    %388 = vmatpush1.bf16.msra.mxu0 %v368
    %389 = vmatprep.subr.bf16.mxu0 0
    %390 = vmatpush1.bf16.msra.mxu0 %v369
    %391 = vmatprep.subr.bf16.mxu0 0
    %392 = vmatpush1.bf16.msra.mxu0 %v370
    %393 = vmatprep.subr.bf16.mxu0 0
    %394 = vmatpush1.bf16.msra.mxu0 %v371
    %395 = vmatprep.subr.bf16.mxu0 0
    %396 = vmatpush1.bf16.msra.mxu0 %v372
    %397 = vmatprep.subr.bf16.mxu0 0
    %398 = vmatpush1.bf16.msra.mxu0 0
    %399 = vmatprep.subr.bf16.mxu0 0
    %400 = vmatpush1.bf16.msra.mxu0 0
    %401 = vmatprep.subr.bf16.mxu0 0
    %402 = vmatpush1.bf16.msra.mxu0 0
    %403 = vmatprep.subr.bf16.mxu0 0
    %404 = vmatpush1.bf16.msra.mxu0 0
    %405 = vmatprep.subr.bf16.mxu0 0
    %406 = vmatpush1.bf16.msra.mxu0 0
    %407 = vmatprep.subr.bf16.mxu0 0
    %408 = vmatpush1.bf16.msra.mxu0 0
    %409 = vmatprep.subr.bf16.mxu0 0
    %410 = vmatpush1.bf16.msra.mxu0 0
    %411 = vmatprep.subr.bf16.mxu0 0
    %412 = vmatpush1.bf16.msra.mxu0 0
    %413 = vmatprep.mubr.bf16.mxu0 0
    %414 = vmatmul.mubr.bf16.gmra.mrb[0].mxu0 %v309
    %v415 = vpop.f32.mrb[0].mxu0
    %v416 = vadd.f32 %v331, %v415
    %v417 = vpop.f32.mrb[0].mxu0
    %v418 = vpop.f32.mrb[0].mxu0
    %v419 = vadd.f32 %v331, %v418
    %v420 = vpop.f32.mrb[0].mxu0
    %421 = vdwg.mxu0
    %422 = vst [vmem:[%s7] sm:$0xff] %v416
    %423 = vst [vmem:[%s7 + $0x8] sm:$0xff] %v419
    // Predicated region
    $region42: #{_forward_impl.1} parent=1 // pred_check
      _
    $region43: #{_forward_impl.1} parent=1 // pred_check_branch
      %425 = sbr.rel (0) target = $region45
    $region44: #{_forward_impl.1} parent=1 // pred_region
      _
    $region45: #{_forward_impl.1} parent=1 // pred_fallthru
      _
    // Predicated region
    $region46: #{_forward_impl.1} parent=1 // pred_check
      _
    $region47: #{_forward_impl.1} parent=1 // pred_check_branch
      %427 = sbr.rel (0) target = $region49
    $region48: #{_forward_impl.1} parent=1 // pred_region
      _
    $region49: #{_forward_impl.1} parent=1 // pred_fallthru
      _
    // Predicated region
    $region50: #{_forward_impl.1} parent=1 // pred_check
      _
    $region51: #{_forward_impl.1} parent=1 // pred_check_branch
      %429 = sbr.rel (0) target = $region53
    $region52: #{_forward_impl.1} parent=1 // pred_region
      _
    $region53: #{_forward_impl.1} parent=1 // pred_fallthru
      _
    // Predicated region
    $region54: #{_forward_impl.1} parent=1 // pred_check
      _
    $region55: #{_forward_impl.1} parent=1 // pred_check_branch
      %431 = sbr.rel (0) target = $region57
    $region56: #{_forward_impl.1} parent=1 // pred_region
      _
    $region57: #{_forward_impl.1} parent=1 // pred_fallthru
      _
    %432 = vsyncpa [#allocation3], 1
    %433 = vsyncpa [#allocation5], 1

</llo_original>
